<compile_context>
chip_gen: v6e
topology: v6e:2x2x1
jax: 0.10.0
libtpu: 0.0.40
codegen_flags: <defaults>
</compile_context>

<pallas_src>
import math
import jax
import jax.numpy as jnp
from jax import lax
from jax.experimental import pallas as pl
from jax.experimental.pallas import tpu as pltpu


def bow_v2_kernel(x_ref, wfc_ref, bfc_ref, wproj_ref, bproj_ref,
                  wlm_ref, blm_ref, out_ref, x2_ref):
    # x_ref block: (TB, T, C) bf16 ; wlm_ref: (C, TV) bf16 ; out_ref: (TB*T, TV) f32
    # x2_ref scratch: (TB*T, C) f32, carried across the (innermost) vocab axis.

    @pl.when(pl.program_id(1) == 0)
    def _compute_features():
        x = x_ref[...]                                             # (TB, T, C) bf16
        TB, T, C = x.shape

        # -- CausalBoW: scaled_dot_product_attention(q=k=v=x, is_causal=True) --
        # Batched contraction on the last dim of both operands (no transpose).
        s = jnp.einsum("btc,bsc->bts", x, x,
                       preferred_element_type=jnp.float32) * (1.0 / math.sqrt(C))
        row = lax.broadcasted_iota(jnp.int32, (T, T), 0)
        col = lax.broadcasted_iota(jnp.int32, (T, T), 1)
        s = jnp.where((col <= row)[None, :, :], s, -jnp.inf)       # causal mask
        m = jnp.max(s, axis=-1, keepdims=True)                     # f32 softmax
        p = jnp.exp(s - m)
        p = p * pl.reciprocal(jnp.sum(p, axis=-1, keepdims=True), approx=True)
        attn = jnp.einsum("bts,bsc->btc", p.astype(x.dtype), x,
                          preferred_element_type=jnp.float32)      # (TB, T, C) f32

        x1 = x.astype(jnp.float32) + attn                          # residual 1

        # -- BoWBlock MLP: x + c_proj(tanh(c_fc(x))) on flattened rows ---------
        xf = x1.reshape(TB * T, C)                                 # (rows, C) f32
        h = jnp.tanh(jnp.dot(xf.astype(jnp.bfloat16), wfc_ref[...],
                             preferred_element_type=jnp.float32) + bfc_ref[...])
        x2_ref[...] = xf + jnp.dot(h.astype(jnp.bfloat16), wproj_ref[...],
                                   preferred_element_type=jnp.float32) + bproj_ref[...]

    # ---- lm_head: lane-dense (rows, TV) output tile -------------------------
    logits = jnp.dot(x2_ref[...].astype(jnp.bfloat16), wlm_ref[...],
                     preferred_element_type=jnp.float32) + blm_ref[...]
    out_ref[...] = logits


def _pick_batch_tile(B, T, max_rows=512):
    """Largest divisor of B with TB*T <= max_rows (fold batches for tall M)."""
    best = 1
    for tb in range(1, B + 1):
        if B % tb == 0 and tb * T <= max(max_rows, T):
            best = tb
    return best


def _pick_vocab_tile(V, max_tv=2048):
    """Largest multiple of 128 that divides V, capped at max_tv (lane-dense)."""
    if V % 128 != 0:
        return V  # full-extent block is always legal
    tv = min(V, max_tv)
    tv -= tv % 128
    while V % tv != 0:
        tv -= 128
    return tv


def _vmem_limit_bytes():
    """Raise the scoped-VMEM cap, staying well inside physical VMEM (v7x: 64 MiB)."""
    try:
        cap = int(pltpu.get_tpu_info().vmem_capacity_bytes)
    except Exception:
        cap = 64 << 20  # conservative fallback if the query is unavailable
    return int(min(96 << 20, (cap * 3) // 4))


def _build_call(B, T, C, H, V, TB, TV, single_buffer_weights):
    rows = TB * T
    const = lambda b, v: (0, 0)
    if single_buffer_weights:
        # Constant index_map => weights DMA'd once; single-buffer to halve
        # their resident VMEM footprint.
        wspec = lambda shp: pl.BlockSpec(shp, const, pipeline_mode=pl.Buffered(1))
    else:
        wspec = lambda shp: pl.BlockSpec(shp, const)

    return pl.pallas_call(
        bow_v2_kernel,
        out_shape=jax.ShapeDtypeStruct((B * T, V), jnp.float32),
        grid_spec=pltpu.PrefetchScalarGridSpec(
            num_scalar_prefetch=0,
            grid=(B // TB, V // TV),
            in_specs=[
                pl.BlockSpec((TB, T, C), lambda b, v: (b, 0, 0)),   # x (bf16)
                wspec((C, H)),                                       # w_fc (bf16)
                wspec((1, H)),                                       # b_fc (f32)
                wspec((H, C)),                                       # w_proj (bf16)
                wspec((1, C)),                                       # b_proj (f32)
                pl.BlockSpec((C, TV), lambda b, v: (0, v)),          # w_lm tile (bf16)
                pl.BlockSpec((1, TV), lambda b, v: (0, v)),          # b_lm tile (f32)
            ],
            out_specs=pl.BlockSpec((rows, TV), lambda b, v: (b, v)),
            scratch_shapes=[pltpu.VMEM((rows, C), jnp.float32)],     # x2 carry
        ),
        compiler_params=pltpu.CompilerParams(
            dimension_semantics=("parallel", "arbitrary"),
            vmem_limit_bytes=_vmem_limit_bytes()),
    )


def bow_v2_forward(idx, params):
    """idx: int32 [B, T]. Returns logits [B, T, vocab_size] (targets=None -> loss None)."""
    wte = params["wte"]            # (vocab, C) f32
    wpe = params["wpe"]            # (block_size, C) f32
    B, T = idx.shape
    C = wte.shape[1]
    H = params["w_fc"].shape[1]
    V = params["w_lm"].shape[1]
    TB = _pick_batch_tile(B, T)
    TV = _pick_vocab_tile(V)

    # glue: embedding lookup + additive positional encoding, then bf16 for DMA/MXU
    x = (wte[idx] + wpe[:T][None, :, :]).astype(jnp.bfloat16)   # (B, T, C)

    args = (x,
            params["w_fc"].astype(jnp.bfloat16), params["b_fc"],
            params["w_proj"].astype(jnp.bfloat16), params["b_proj"],
            params["w_lm"].astype(jnp.bfloat16), params["b_lm"])

    try:
        out = _build_call(B, T, C, H, V, TB, TV, single_buffer_weights=True)(*args)
    except Exception:
        # pipeline_mode single-buffering unsupported on this jax build; retry
        # with default (double-buffered) weight specs — same kernel math.
        out = _build_call(B, T, C, H, V, TB, TV, single_buffer_weights=False)(*args)
    return out.reshape(B, T, V)


def init_params(key, n_embd, n_embd2, block_size, vocab_size):
    ks = jax.random.split(key, 7)
    sc = 0.02
    return {
        "wte":    sc * jax.random.normal(ks[0], (vocab_size, n_embd), jnp.float32),
        "wpe":    sc * jax.random.normal(ks[1], (block_size, n_embd), jnp.float32),
        "w_fc":   sc * jax.random.normal(ks[2], (n_embd, n_embd2), jnp.float32),
        "b_fc":   jnp.zeros((1, n_embd2), jnp.float32),
        "w_proj": sc * jax.random.normal(ks[3], (n_embd2, n_embd), jnp.float32),
        "b_proj": jnp.zeros((1, n_embd), jnp.float32),
        "w_lm":   sc * jax.random.normal(ks[4], (n_embd, vocab_size), jnp.float32),
        "b_lm":   jnp.zeros((1, vocab_size), jnp.float32),
    }


def reference_forward(idx, params):
    """Pure-JAX f32 reference of the same math, for a sanity check."""
    x = params["wte"][idx] + params["wpe"][: idx.shape[1]][None]
    B, T, C = x.shape
    s = jnp.einsum("btc,bsc->bts", x, x) / math.sqrt(C)
    mask = jnp.tril(jnp.ones((T, T), bool))
    s = jnp.where(mask[None], s, -jnp.inf)
    p = jax.nn.softmax(s, axis=-1)
    x = x + jnp.einsum("bts,bsc->btc", p, x)
    h = jnp.tanh(x @ params["w_fc"] + params["b_fc"][0])
    x = x + h @ params["w_proj"] + params["b_proj"][0]
    return x @ params["w_lm"] + params["b_lm"][0]


if __name__ == "__main__":
    n_embd, n_embd2 = 32, 64
    block_size, vocab_size = 8, 128
    B, T = 2, block_size

    key = jax.random.PRNGKey(0)
    kp, ki = jax.random.split(key)
    params = init_params(kp, n_embd, n_embd2, block_size, vocab_size)
    idx = jax.random.randint(ki, (B, T), 0, vocab_size, dtype=jnp.int32)

    logits = bow_v2_forward(idx, params)
    logits = jax.block_until_ready(logits)

    ref = reference_forward(idx, params)
    assert logits.shape == (B, T, vocab_size)
    # Tolerance relaxed vs. pure-f32: matmul operands are bf16 (f32 accumulation).
    assert jnp.allclose(logits, ref, atol=2e-3, rtol=2e-2), "mismatch vs reference"
    print("KERNEL_OK")
</pallas_src>

<mosaic_0001>
module attributes {stable_mosaic.version = 11 : i64} {
  func.func @bow_v2_kernel(%arg0: i32, %arg1: i32, %arg2: memref<2x8x32xbf16, #tpu.memory_space<vmem>>, %arg3: memref<32x64xbf16, #tpu.memory_space<vmem>>, %arg4: memref<1x64xf32, #tpu.memory_space<vmem>>, %arg5: memref<64x32xbf16, #tpu.memory_space<vmem>>, %arg6: memref<1x32xf32, #tpu.memory_space<vmem>>, %arg7: memref<32x128xbf16, #tpu.memory_space<vmem>>, %arg8: memref<1x128xf32, #tpu.memory_space<vmem>>, %arg9: memref<16x128xf32, #tpu.memory_space<vmem>>, %arg10: memref<16x32xf32, #tpu.memory_space<vmem>>) attributes {dimension_semantics = [#tpu.dimension_semantics<parallel>, #tpu.dimension_semantics<arbitrary>], iteration_bounds = array<i64: 1, 1>, scalar_prefetch = 0 : i64, scratch_operands = 1 : i64, tpu.core_type = #tpu.core_type<tc>, window_params = [{transform_indices = @transform_0, window_bounds = array<i64: 2, 8, 32>}, {pipeline_mode = #tpu.pipeline_mode<synchronous>, transform_indices = @transform_1, window_bounds = array<i64: 32, 64>}, {pipeline_mode = #tpu.pipeline_mode<synchronous>, transform_indices = @transform_2, window_bounds = array<i64: 1, 64>}, {pipeline_mode = #tpu.pipeline_mode<synchronous>, transform_indices = @transform_3, window_bounds = array<i64: 64, 32>}, {pipeline_mode = #tpu.pipeline_mode<synchronous>, transform_indices = @transform_4, window_bounds = array<i64: 1, 32>}, {transform_indices = @transform_5, window_bounds = array<i64: 32, 128>}, {transform_indices = @transform_6, window_bounds = array<i64: 1, 128>}, {transform_indices = @transform_7, window_bounds = array<i64: 16, 128>}]} {
    %c0_i32 = arith.constant 0 : i32
    %0 = arith.cmpi eq, %arg1, %c0_i32 : i32
    %1 = arith.extui %0 : i1 to i32
    %c0_i32_0 = arith.constant 0 : i32
    %2 = arith.cmpi ne, %1, %c0_i32_0 : i32
    scf.if %2 {
      %c0_8 = arith.constant 0 : index
      %c0_9 = arith.constant 0 : index
      %c0_10 = arith.constant 0 : index
      %11 = vector.load %arg2[%c0_8, %c0_9, %c0_10] : memref<2x8x32xbf16, #tpu.memory_space<vmem>>, vector<2x8x32xbf16>
      "tpu.trace_start"() <{level = 10 : i32, message = "btc,bsc->bts"}> : () -> ()
      %cst_11 = arith.constant dense<0.000000e+00> : vector<2x8x8xf32>
      %12 = tpu.matmul %11, %11, %cst_11 {dimension_numbers = #tpu.dot_dimension_numbers<[2], [2], [1], [1], [0, 0, 0, 1, 1, 1], [0], [0]>} : vector<2x8x32xbf16>, vector<2x8x32xbf16>, vector<2x8x8xf32> -> vector<2x8x8xf32>
      "tpu.trace_stop"() : () -> ()
      %cst_12 = arith.constant 0.176776692 : f32
      %13 = vector.broadcast %cst_12 : f32 to vector<2x8x8xf32>
      %14 = arith.mulf %12, %13 : vector<2x8x8xf32>
      %15 = tpu.iota {dimensions = array<i32: 0>} : vector<8x8xi32>
      %16 = tpu.iota {dimensions = array<i32: 1>} : vector<8x8xi32>
      %17 = arith.cmpi sle, %16, %15 : vector<8x8xi32>
      %18 = vector.shape_cast %17 : vector<8x8xi1> to vector<1x8x8xi1>
      %cst_13 = arith.constant 0xFF800000 : f32
      %19 = vector.shape_cast %18 : vector<1x8x8xi1> to vector<1x8x8xi1>
      %20 = vector.broadcast %19 : vector<1x8x8xi1> to vector<2x8x8xi1>
      %21 = vector.broadcast %cst_13 : f32 to vector<2x8x8xf32>
      %22 = arith.select %20, %14, %21 : vector<2x8x8xi1>, vector<2x8x8xf32>
      %cst_14 = arith.constant dense<0xFF800000> : vector<2x8xf32>
      %23 = vector.multi_reduction <maximumf>, %22, %cst_14 [2] : vector<2x8x8xf32> to vector<2x8xf32>
      %24 = vector.shape_cast %23 : vector<2x8xf32> to vector<2x8x1xf32>
      %25 = vector.broadcast %24 : vector<2x8x1xf32> to vector<2x8x8xf32>
      %26 = arith.subf %22, %25 : vector<2x8x8xf32>
      %27 = math.exp %26 : vector<2x8x8xf32>
      %cst_15 = arith.constant dense<0.000000e+00> : vector<2x8xf32>
      %28 = vector.multi_reduction <add>, %27, %cst_15 [2] : vector<2x8x8xf32> to vector<2x8xf32>
      %29 = vector.shape_cast %28 : vector<2x8xf32> to vector<2x8x1xf32>
      %30 = tpu.reciprocal %29 {approx = true} : vector<2x8x1xf32> -> vector<2x8x1xf32>
      %31 = vector.broadcast %30 : vector<2x8x1xf32> to vector<2x8x8xf32>
      %32 = arith.mulf %27, %31 : vector<2x8x8xf32>
      %33 = arith.truncf %32 : vector<2x8x8xf32> to vector<2x8x8xbf16>
      "tpu.trace_start"() <{level = 10 : i32, message = "bts,bsc->btc"}> : () -> ()
      %cst_16 = arith.constant dense<0.000000e+00> : vector<2x8x32xf32>
      %34 = tpu.matmul %33, %11, %cst_16 {dimension_numbers = #tpu.dot_dimension_numbers<[2], [1], [1], [2], [0, 0, 0, 1, 1, 2], [0], [0]>} : vector<2x8x8xbf16>, vector<2x8x32xbf16>, vector<2x8x32xf32> -> vector<2x8x32xf32>
      "tpu.trace_stop"() : () -> ()
      %35 = arith.extf %11 : vector<2x8x32xbf16> to vector<2x8x32xf32>
      %36 = arith.addf %35, %34 : vector<2x8x32xf32>
      %37 = vector.shape_cast %36 : vector<2x8x32xf32> to vector<16x32xf32>
      %38 = arith.truncf %37 : vector<16x32xf32> to vector<16x32xbf16>
      %c0_17 = arith.constant 0 : index
      %c0_18 = arith.constant 0 : index
      %39 = vector.load %arg3[%c0_17, %c0_18] : memref<32x64xbf16, #tpu.memory_space<vmem>>, vector<32x64xbf16>
      %cst_19 = arith.constant dense<0.000000e+00> : vector<16x64xf32>
      %40 = tpu.matmul %38, %39, %cst_19 {dimension_numbers = #tpu.dot_dimension_numbers<[1], [0], [0], [1], [0, 0, 1, 1], [], []>} : vector<16x32xbf16>, vector<32x64xbf16>, vector<16x64xf32> -> vector<16x64xf32>
      %c0_20 = arith.constant 0 : index
      %c0_21 = arith.constant 0 : index
      %41 = vector.load %arg4[%c0_20, %c0_21] : memref<1x64xf32, #tpu.memory_space<vmem>>, vector<1x64xf32>
      %42 = vector.broadcast %41 : vector<1x64xf32> to vector<16x64xf32>
      %43 = arith.addf %40, %42 : vector<16x64xf32>
      %44 = math.tanh %43 : vector<16x64xf32>
      %45 = arith.truncf %44 : vector<16x64xf32> to vector<16x64xbf16>
      %c0_22 = arith.constant 0 : index
      %c0_23 = arith.constant 0 : index
      %46 = vector.load %arg5[%c0_22, %c0_23] : memref<64x32xbf16, #tpu.memory_space<vmem>>, vector<64x32xbf16>
      %cst_24 = arith.constant dense<0.000000e+00> : vector<16x32xf32>
      %47 = tpu.matmul %45, %46, %cst_24 {dimension_numbers = #tpu.dot_dimension_numbers<[1], [0], [0], [1], [0, 0, 1, 1], [], []>} : vector<16x64xbf16>, vector<64x32xbf16>, vector<16x32xf32> -> vector<16x32xf32>
      %48 = arith.addf %37, %47 : vector<16x32xf32>
      %c0_25 = arith.constant 0 : index
      %c0_26 = arith.constant 0 : index
      %49 = vector.load %arg6[%c0_25, %c0_26] : memref<1x32xf32, #tpu.memory_space<vmem>>, vector<1x32xf32>
      %50 = vector.broadcast %49 : vector<1x32xf32> to vector<16x32xf32>
      %51 = arith.addf %48, %50 : vector<16x32xf32>
      %c0_27 = arith.constant 0 : index
      %c0_28 = arith.constant 0 : index
      %52 = vector.load %arg10[%c0_27, %c0_28] : memref<16x32xf32, #tpu.memory_space<vmem>>, vector<16x32xf32>
      tpu.vector_store %arg10[%c0_27, %c0_28], %51 {strides = array<i32>} : memref<16x32xf32, #tpu.memory_space<vmem>>, vector<16x32xf32>,
    } else {
    }
    %c0 = arith.constant 0 : index
    %c0_1 = arith.constant 0 : index
    %3 = vector.load %arg10[%c0, %c0_1] : memref<16x32xf32, #tpu.memory_space<vmem>>, vector<16x32xf32>
    %4 = arith.truncf %3 : vector<16x32xf32> to vector<16x32xbf16>
    %c0_2 = arith.constant 0 : index
    %c0_3 = arith.constant 0 : index
    %5 = vector.load %arg7[%c0_2, %c0_3] : memref<32x128xbf16, #tpu.memory_space<vmem>>, vector<32x128xbf16>
    %cst = arith.constant dense<0.000000e+00> : vector<16x128xf32>
    %6 = tpu.matmul %4, %5, %cst {dimension_numbers = #tpu.dot_dimension_numbers<[1], [0], [0], [1], [0, 0, 1, 1], [], []>} : vector<16x32xbf16>, vector<32x128xbf16>, vector<16x128xf32> -> vector<16x128xf32>
    %c0_4 = arith.constant 0 : index
    %c0_5 = arith.constant 0 : index
    %7 = vector.load %arg8[%c0_4, %c0_5] : memref<1x128xf32, #tpu.memory_space<vmem>>, vector<1x128xf32>
    %8 = vector.broadcast %7 : vector<1x128xf32> to vector<16x128xf32>
    %9 = arith.addf %6, %8 : vector<16x128xf32>
    %c0_6 = arith.constant 0 : index
    %c0_7 = arith.constant 0 : index
    %10 = vector.load %arg9[%c0_6, %c0_7] : memref<16x128xf32, #tpu.memory_space<vmem>>, vector<16x128xf32>
    tpu.vector_store %arg9[%c0_6, %c0_7], %9 {strides = array<i32>} : memref<16x128xf32, #tpu.memory_space<vmem>>, vector<16x128xf32>,
    return
  }
  func.func @transform_0(%arg0: i32, %arg1: i32) -> (i32, i32, i32) {
    %c0_i32 = arith.constant 0 : i32
    %c0_i32_0 = arith.constant 0 : i32
    %c0_i32_1 = arith.constant 0 : i32
    return %arg0, %c0_i32, %c0_i32_0 : i32, i32, i32
  }
  func.func @transform_1(%arg0: i32, %arg1: i32) -> (i32, i32) {
    %c0_i32 = arith.constant 0 : i32
    %c0_i32_0 = arith.constant 0 : i32
    %c0_i32_1 = arith.constant 0 : i32
    return %c0_i32, %c0_i32_0 : i32, i32
  }
  func.func @transform_2(%arg0: i32, %arg1: i32) -> (i32, i32) {
    %c0_i32 = arith.constant 0 : i32
    %c0_i32_0 = arith.constant 0 : i32
    %c0_i32_1 = arith.constant 0 : i32
    return %c0_i32, %c0_i32_0 : i32, i32
  }
  func.func @transform_3(%arg0: i32, %arg1: i32) -> (i32, i32) {
    %c0_i32 = arith.constant 0 : i32
    %c0_i32_0 = arith.constant 0 : i32
    %c0_i32_1 = arith.constant 0 : i32
    return %c0_i32, %c0_i32_0 : i32, i32
  }
  func.func @transform_4(%arg0: i32, %arg1: i32) -> (i32, i32) {
    %c0_i32 = arith.constant 0 : i32
    %c0_i32_0 = arith.constant 0 : i32
    %c0_i32_1 = arith.constant 0 : i32
    return %c0_i32, %c0_i32_0 : i32, i32
  }
  func.func @transform_5(%arg0: i32, %arg1: i32) -> (i32, i32) {
    %c0_i32 = arith.constant 0 : i32
    %c0_i32_0 = arith.constant 0 : i32
    return %c0_i32, %arg1 : i32, i32
  }
  func.func @transform_6(%arg0: i32, %arg1: i32) -> (i32, i32) {
    %c0_i32 = arith.constant 0 : i32
    %c0_i32_0 = arith.constant 0 : i32
    return %c0_i32, %arg1 : i32, i32
  }
  func.func @transform_7(%arg0: i32, %arg1: i32) -> (i32, i32) {
    %c0_i32 = arith.constant 0 : i32
    return %arg0, %arg1 : i32, i32
  }
}

module attributes {stable_mosaic.version = 11 : i64} {
  func.func @bow_v2_kernel(%arg0: i32, %arg1: i32, %arg2: memref<2x8x32xbf16, #tpu.memory_space<vmem>>, %arg3: memref<32x64xbf16, #tpu.memory_space<vmem>>, %arg4: memref<1x64xf32, #tpu.memory_space<vmem>>, %arg5: memref<64x32xbf16, #tpu.memory_space<vmem>>, %arg6: memref<1x32xf32, #tpu.memory_space<vmem>>, %arg7: memref<32x128xbf16, #tpu.memory_space<vmem>>, %arg8: memref<1x128xf32, #tpu.memory_space<vmem>>, %arg9: memref<16x128xf32, #tpu.memory_space<vmem>>, %arg10: memref<16x32xf32, #tpu.memory_space<vmem>>) attributes {dimension_semantics = [#tpu.dimension_semantics<parallel>, #tpu.dimension_semantics<arbitrary>], iteration_bounds = array<i64: 1, 1>, scalar_prefetch = 0 : i64, scratch_operands = 1 : i64, tpu.core_type = #tpu.core_type<tc>, window_params = [{transform_indices = @transform_0, window_bounds = array<i64: 2, 8, 32>}, {pipeline_mode = #tpu.pipeline_mode<synchronous>, transform_indices = @transform_1, window_bounds = array<i64: 32, 64>}, {pipeline_mode = #tpu.pipeline_mode<synchronous>, transform_indices = @transform_2, window_bounds = array<i64: 1, 64>}, {pipeline_mode = #tpu.pipeline_mode<synchronous>, transform_indices = @transform_3, window_bounds = array<i64: 64, 32>}, {pipeline_mode = #tpu.pipeline_mode<synchronous>, transform_indices = @transform_4, window_bounds = array<i64: 1, 32>}, {transform_indices = @transform_5, window_bounds = array<i64: 32, 128>}, {transform_indices = @transform_6, window_bounds = array<i64: 1, 128>}, {transform_indices = @transform_7, window_bounds = array<i64: 16, 128>}]} {
    %c0_i32 = arith.constant 0 : i32
    %0 = arith.cmpi eq, %arg1, %c0_i32 : i32
    %1 = arith.extui %0 : i1 to i32
    %c0_i32_0 = arith.constant 0 : i32
    %2 = arith.cmpi ne, %1, %c0_i32_0 : i32
    scf.if %2 {
      %c0_8 = arith.constant 0 : index
      %c0_9 = arith.constant 0 : index
      %c0_10 = arith.constant 0 : index
      %11 = vector.load %arg2[%c0_8, %c0_9, %c0_10] : memref<2x8x32xbf16, #tpu.memory_space<vmem>>, vector<2x8x32xbf16>
      "tpu.trace_start"() <{level = 10 : i32, message = "btc,bsc->bts"}> : () -> ()
      %cst_11 = arith.constant dense<0.000000e+00> : vector<2x8x8xf32>
      %12 = tpu.matmul %11, %11, %cst_11 {dimension_numbers = #tpu.dot_dimension_numbers<[2], [2], [1], [1], [0, 0, 0, 1, 1, 1], [0], [0]>} : vector<2x8x32xbf16>, vector<2x8x32xbf16>, vector<2x8x8xf32> -> vector<2x8x8xf32>
      "tpu.trace_stop"() : () -> ()
      %cst_12 = arith.constant 0.176776692 : f32
      %13 = vector.broadcast %cst_12 : f32 to vector<2x8x8xf32>
      %14 = arith.mulf %12, %13 : vector<2x8x8xf32>
      %15 = tpu.iota {dimensions = array<i32: 0>} : vector<8x8xi32>
      %16 = tpu.iota {dimensions = array<i32: 1>} : vector<8x8xi32>
      %17 = arith.cmpi sle, %16, %15 : vector<8x8xi32>
      %18 = vector.shape_cast %17 : vector<8x8xi1> to vector<1x8x8xi1>
      %cst_13 = arith.constant 0xFF800000 : f32
      %19 = vector.shape_cast %18 : vector<1x8x8xi1> to vector<1x8x8xi1>
      %20 = vector.broadcast %19 : vector<1x8x8xi1> to vector<2x8x8xi1>
      %21 = vector.broadcast %cst_13 : f32 to vector<2x8x8xf32>
      %22 = arith.select %20, %14, %21 : vector<2x8x8xi1>, vector<2x8x8xf32>
      %cst_14 = arith.constant dense<0xFF800000> : vector<2x8xf32>
      %23 = vector.multi_reduction <maximumf>, %22, %cst_14 [2] : vector<2x8x8xf32> to vector<2x8xf32>
      %24 = vector.shape_cast %23 : vector<2x8xf32> to vector<2x8x1xf32>
      %25 = vector.broadcast %24 : vector<2x8x1xf32> to vector<2x8x8xf32>
      %26 = arith.subf %22, %25 : vector<2x8x8xf32>
      %27 = math.exp %26 : vector<2x8x8xf32>
      %cst_15 = arith.constant dense<0.000000e+00> : vector<2x8xf32>
      %28 = vector.multi_reduction <add>, %27, %cst_15 [2] : vector<2x8x8xf32> to vector<2x8xf32>
      %29 = vector.shape_cast %28 : vector<2x8xf32> to vector<2x8x1xf32>
      %30 = tpu.reciprocal %29 {approx = true} : vector<2x8x1xf32> -> vector<2x8x1xf32>
      %31 = vector.broadcast %30 : vector<2x8x1xf32> to vector<2x8x8xf32>
      %32 = arith.mulf %27, %31 : vector<2x8x8xf32>
      %33 = arith.truncf %32 : vector<2x8x8xf32> to vector<2x8x8xbf16>
      "tpu.trace_start"() <{level = 10 : i32, message = "bts,bsc->btc"}> : () -> ()
      %cst_16 = arith.constant dense<0.000000e+00> : vector<2x8x32xf32>
      %34 = tpu.matmul %33, %11, %cst_16 {dimension_numbers = #tpu.dot_dimension_numbers<[2], [1], [1], [2], [0, 0, 0, 1, 1, 2], [0], [0]>} : vector<2x8x8xbf16>, vector<2x8x32xbf16>, vector<2x8x32xf32> -> vector<2x8x32xf32>
      "tpu.trace_stop"() : () -> ()
      %35 = arith.extf %11 : vector<2x8x32xbf16> to vector<2x8x32xf32>
      %36 = arith.addf %35, %34 : vector<2x8x32xf32>
      %37 = vector.shape_cast %36 : vector<2x8x32xf32> to vector<16x32xf32>
      %38 = arith.truncf %37 : vector<16x32xf32> to vector<16x32xbf16>
      %c0_17 = arith.constant 0 : index
      %c0_18 = arith.constant 0 : index
      %39 = vector.load %arg3[%c0_17, %c0_18] : memref<32x64xbf16, #tpu.memory_space<vmem>>, vector<32x64xbf16>
      %cst_19 = arith.constant dense<0.000000e+00> : vector<16x64xf32>
      %40 = tpu.matmul %38, %39, %cst_19 {dimension_numbers = #tpu.dot_dimension_numbers<[1], [0], [0], [1], [0, 0, 1, 1], [], []>} : vector<16x32xbf16>, vector<32x64xbf16>, vector<16x64xf32> -> vector<16x64xf32>
      %c0_20 = arith.constant 0 : index
      %c0_21 = arith.constant 0 : index
      %41 = vector.load %arg4[%c0_20, %c0_21] : memref<1x64xf32, #tpu.memory_space<vmem>>, vector<1x64xf32>
      %42 = vector.broadcast %41 : vector<1x64xf32> to vector<16x64xf32>
      %43 = arith.addf %40, %42 : vector<16x64xf32>
      %44 = math.tanh %43 : vector<16x64xf32>
      %45 = arith.truncf %44 : vector<16x64xf32> to vector<16x64xbf16>
      %c0_22 = arith.constant 0 : index
      %c0_23 = arith.constant 0 : index
      %46 = vector.load %arg5[%c0_22, %c0_23] : memref<64x32xbf16, #tpu.memory_space<vmem>>, vector<64x32xbf16>
      %cst_24 = arith.constant dense<0.000000e+00> : vector<16x32xf32>
      %47 = tpu.matmul %45, %46, %cst_24 {dimension_numbers = #tpu.dot_dimension_numbers<[1], [0], [0], [1], [0, 0, 1, 1], [], []>} : vector<16x64xbf16>, vector<64x32xbf16>, vector<16x32xf32> -> vector<16x32xf32>
      %48 = arith.addf %37, %47 : vector<16x32xf32>
      %c0_25 = arith.constant 0 : index
      %c0_26 = arith.constant 0 : index
      %49 = vector.load %arg6[%c0_25, %c0_26] : memref<1x32xf32, #tpu.memory_space<vmem>>, vector<1x32xf32>
      %50 = vector.broadcast %49 : vector<1x32xf32> to vector<16x32xf32>
      %51 = arith.addf %48, %50 : vector<16x32xf32>
      %c0_27 = arith.constant 0 : index
      %c0_28 = arith.constant 0 : index
      %52 = vector.load %arg10[%c0_27, %c0_28] : memref<16x32xf32, #tpu.memory_space<vmem>>, vector<16x32xf32>
      tpu.vector_store %arg10[%c0_27, %c0_28], %51 {strides = array<i32>} : memref<16x32xf32, #tpu.memory_space<vmem>>, vector<16x32xf32>,
    } else {
    }
    %c0 = arith.constant 0 : index
    %c0_1 = arith.constant 0 : index
    %3 = vector.load %arg10[%c0, %c0_1] : memref<16x32xf32, #tpu.memory_space<vmem>>, vector<16x32xf32>
    %4 = arith.truncf %3 : vector<16x32xf32> to vector<16x32xbf16>
    %c0_2 = arith.constant 0 : index
    %c0_3 = arith.constant 0 : index
    %5 = vector.load %arg7[%c0_2, %c0_3] : memref<32x128xbf16, #tpu.memory_space<vmem>>, vector<32x128xbf16>
    %cst = arith.constant dense<0.000000e+00> : vector<16x128xf32>
    %6 = tpu.matmul %4, %5, %cst {dimension_numbers = #tpu.dot_dimension_numbers<[1], [0], [0], [1], [0, 0, 1, 1], [], []>} : vector<16x32xbf16>, vector<32x128xbf16>, vector<16x128xf32> -> vector<16x128xf32>
    %c0_4 = arith.constant 0 : index
    %c0_5 = arith.constant 0 : index
    %7 = vector.load %arg8[%c0_4, %c0_5] : memref<1x128xf32, #tpu.memory_space<vmem>>, vector<1x128xf32>
    %8 = vector.broadcast %7 : vector<1x128xf32> to vector<16x128xf32>
    %9 = arith.addf %6, %8 : vector<16x128xf32>
    %c0_6 = arith.constant 0 : index
    %c0_7 = arith.constant 0 : index
    %10 = vector.load %arg9[%c0_6, %c0_7] : memref<16x128xf32, #tpu.memory_space<vmem>>, vector<16x128xf32>
    tpu.vector_store %arg9[%c0_6, %c0_7], %9 {strides = array<i32>} : memref<16x128xf32, #tpu.memory_space<vmem>>, vector<16x128xf32>,
    return
  }
  func.func @transform_0(%arg0: i32, %arg1: i32) -> (i32, i32, i32) {
    %c0_i32 = arith.constant 0 : i32
    %c0_i32_0 = arith.constant 0 : i32
    %c0_i32_1 = arith.constant 0 : i32
    return %arg0, %c0_i32, %c0_i32_0 : i32, i32, i32
  }
  func.func @transform_1(%arg0: i32, %arg1: i32) -> (i32, i32) {
    %c0_i32 = arith.constant 0 : i32
    %c0_i32_0 = arith.constant 0 : i32
    %c0_i32_1 = arith.constant 0 : i32
    return %c0_i32, %c0_i32_0 : i32, i32
  }
  func.func @transform_2(%arg0: i32, %arg1: i32) -> (i32, i32) {
    %c0_i32 = arith.constant 0 : i32
    %c0_i32_0 = arith.constant 0 : i32
    %c0_i32_1 = arith.constant 0 : i32
    return %c0_i32, %c0_i32_0 : i32, i32
  }
  func.func @transform_3(%arg0: i32, %arg1: i32) -> (i32, i32) {
    %c0_i32 = arith.constant 0 : i32
    %c0_i32_0 = arith.constant 0 : i32
    %c0_i32_1 = arith.constant 0 : i32
    return %c0_i32, %c0_i32_0 : i32, i32
  }
  func.func @transform_4(%arg0: i32, %arg1: i32) -> (i32, i32) {
    %c0_i32 = arith.constant 0 : i32
    %c0_i32_0 = arith.constant 0 : i32
    %c0_i32_1 = arith.constant 0 : i32
    return %c0_i32, %c0_i32_0 : i32, i32
  }
  func.func @transform_5(%arg0: i32, %arg1: i32) -> (i32, i32) {
    %c0_i32 = arith.constant 0 : i32
    %c0_i32_0 = arith.constant 0 : i32
    return %c0_i32, %arg1 : i32, i32
  }
  func.func @transform_6(%arg0: i32, %arg1: i32) -> (i32, i32) {
    %c0_i32 = arith.constant 0 : i32
    %c0_i32_0 = arith.constant 0 : i32
    return %c0_i32, %arg1 : i32, i32
  }
  func.func @transform_7(%arg0: i32, %arg1: i32) -> (i32, i32) {
    %c0_i32 = arith.constant 0 : i32
    return %arg0, %arg1 : i32, i32
  }
}

</mosaic_0001>

<llo_original>
// kernel: tpu_custom_call.1
$region0: #{tpu_custom_call.1}
  #allocation0 [shape = 'u32[]', space=smem, size = 0x4, offset = 0x4, fixed_abs, tag = 'smem constant byte address 0x4 - core index']
  #allocation1 [shape = 'u32[144,128]{1,0:T(1,128)}', space=vmem, size = 0x12000, scoped, tag = 'internal scratch']
  #allocation2 [shape = 'f32[16,32]{1,0:T(8,128)}', space=vmem, size = 0x2000, scoped, tag = 'scratch operand']
  %s0 = inlined_call_operand.vmem [shape: bf16[2,8,32], index: 0, kind: input, shape index: {}]
  %s1 = inlined_call_operand.vmem [shape: bf16[32,64], index: 1, kind: input, shape index: {}]
  %s2 = inlined_call_operand.vmem [shape: f32[1,64], index: 2, kind: input, shape index: {}]
  %s3 = inlined_call_operand.vmem [shape: bf16[64,32], index: 3, kind: input, shape index: {}]
  %s4 = inlined_call_operand.vmem [shape: f32[1,32], index: 4, kind: input, shape index: {}]
  %s5 = inlined_call_operand.vmem [shape: bf16[32,128], index: 5, kind: input, shape index: {}]
  %s6 = inlined_call_operand.vmem [shape: f32[1,128], index: 6, kind: input, shape index: {}]
  %s7 = inlined_call_operand.hbm [shape: f32[16,128], index: 7, kind: output, shape index: {}]
  %s8 = sld [smem:[#allocation0]]
  $region42: #{tpu_custom_call.1} parent=0
    _
  %s10 = ssub.s32 1, %s8
  %s11 = scalar_select 0, %s10, %s8
  $region1: #{tpu_custom_call.1} parent=0
    #allocation3 [shape = 'u8[8192]{0}', space=vmem, size = 0x2000, scoped, tag = 'output window, operand 0, single buffered']
    #allocation4 [shape = 's32[1]{0}', space=sflag, size = 0x4, scoped, tag = 'scoped memory for tpu_custom_call.1']
    %12 = vsyncpa [#allocation4], 0
    // Predicated region
    $region2: #{tpu_custom_call.1} parent=1 // pred_check
      _
    $region3: #{tpu_custom_call.1} parent=1 // pred_check_branch
      %14 = sbr.rel (0) target = $region5
    $region4: #{tpu_custom_call.1} parent=1 // pred_region
      _
    $region5: #{tpu_custom_call.1} parent=1 // pred_fallthru
      _
    // Predicated region
    $region6: #{tpu_custom_call.1} parent=1 // pred_check
      _
    $region7: #{tpu_custom_call.1} parent=1 // pred_check_branch
      %16 = sbr.rel (0) target = $region9
    $region8: #{tpu_custom_call.1} parent=1 // pred_region
      _
    $region9: #{tpu_custom_call.1} parent=1 // pred_fallthru
      _
    // Predicated region
    $region10: #{tpu_custom_call.1} parent=1 // pred_check
      _
    $region11: #{tpu_custom_call.1} parent=1 // pred_check_branch
      %18 = sbr.rel (0) target = $region13
    $region12: #{tpu_custom_call.1} parent=1 // pred_region
      _
    $region13: #{tpu_custom_call.1} parent=1 // pred_fallthru
      _
    // Predicated region
    $region14: #{tpu_custom_call.1} parent=1 // pred_check
      _
    $region15: #{tpu_custom_call.1} parent=1 // pred_check_branch
      %20 = sbr.rel (0) target = $region17
    $region16: #{tpu_custom_call.1} parent=1 // pred_region
      _
    $region17: #{tpu_custom_call.1} parent=1 // pred_fallthru
      _
    // Predicated region
    $region18: #{tpu_custom_call.1} parent=1 // pred_check
      _
    $region19: #{tpu_custom_call.1} parent=1 // pred_check_branch
      %22 = sbr.rel (0) target = $region21
    $region20: #{tpu_custom_call.1} parent=1 // pred_region
      _
    $region21: #{tpu_custom_call.1} parent=1 // pred_fallthru
      _
    // Predicated region
    $region22: #{tpu_custom_call.1} parent=1 // pred_check
      _
    $region23: #{tpu_custom_call.1} parent=1 // pred_check_branch
      %24 = sbr.rel (0) target = $region25
    $region24: #{tpu_custom_call.1} parent=1 // pred_region
      _
    $region25: #{tpu_custom_call.1} parent=1 // pred_fallthru
      _
    // Predicated region
    $region26: #{tpu_custom_call.1} parent=1 // pred_check
      _
    $region27: #{tpu_custom_call.1} parent=1 // pred_check_branch
      %26 = sbr.rel (0) target = $region29
    $region28: #{tpu_custom_call.1} parent=1 // pred_region
      _
    $region29: #{tpu_custom_call.1} parent=1 // pred_fallthru
      _
    %p28 = scmp.eq.s32.totalorder 0, 0
    // Predicated region
    $region30: #{tpu_custom_call.1} parent=1 // pred_check
      %p29 = pneg %p28
    $region31: #{tpu_custom_call.1} parent=1 // pred_check_branch
      %31 = sbr.rel (%p29) target = $region33
    $region32: #{tpu_custom_call.1} parent=1 // pred_region
      %v32 = vld [vmem:[%s0] sm:$0xf]
      %v33 = vld [vmem:[%s0 + $0x4] sm:$0xf]
      %vm34 = vcmask 261120
      %v36 = vsel %vm34, %v32, 0
      %38 = vmatprep.subr.bf16.mxu0 0
      %39 = vmatpush1.bf16.xpose.msra.mxu0 0
      %40 = vmatprep.subr.bf16.mxu0 0
      %41 = vmatpush1.bf16.xpose.msra.mxu0 0
      %42 = vmatprep.subr.bf16.mxu0 0
      %43 = vmatpush1.bf16.xpose.msra.mxu0 0
      %44 = vmatprep.subr.bf16.mxu0 0
      %45 = vmatpush1.bf16.xpose.msra.mxu0 0
      %46 = vmatprep.subr.bf16.mxu0 0
      %47 = vmatpush1.bf16.xpose.msra.mxu0 0
      %48 = vmatprep.subr.bf16.mxu0 0
      %49 = vmatpush1.bf16.xpose.msra.mxu0 0
      %50 = vmatprep.subr.bf16.mxu0 0
      %51 = vmatpush1.bf16.xpose.msra.mxu0 0
      %52 = vmatprep.subr.bf16.mxu0 0
      %53 = vmatpush1.bf16.xpose.msra.mxu0 %v36
      %54 = vmatprep.subr.bf16.mxu0 0
      %55 = vmatpush2.bf16.xpose.msra.mxu0 0
      %56 = vmatprep.subr.bf16.mxu0 0
      %57 = vmatpush2.bf16.xpose.msra.mxu0 0
      %58 = vmatprep.subr.bf16.mxu0 0
      %59 = vmatpush2.bf16.xpose.msra.mxu0 0
      %60 = vmatprep.subr.bf16.mxu0 0
      %61 = vmatpush2.bf16.xpose.msra.mxu0 0
      %62 = vmatprep.subr.bf16.mxu0 0
      %63 = vmatpush2.bf16.xpose.msra.mxu0 0
      %64 = vmatprep.subr.bf16.mxu0 0
      %65 = vmatpush2.bf16.xpose.msra.mxu0 0
      %66 = vmatprep.subr.bf16.mxu0 0
      %67 = vmatpush2.bf16.xpose.msra.mxu0 0
      %68 = vmatprep.subr.bf16.mxu0 0
      %69 = vmatpush2.bf16.xpose.msra.mxu0 0
      %70 = vmatprep.mubr.bf16.mxu0 0
      %71 = vmatmul.mubr.bf16.gmra.mxu0 %v36
      %v72 = vpop.f32.mrf.mxu0
      %v73 = vadd.f32 0.0, %v72
      %v74 = vpop.f32.mrf.mxu0
      %v75 = vpop.f32.mrf.mxu0
      %v76 = vpop.f32.mrf.mxu0
      %77 = vdwg.mxu0
      %v79 = vsel %vm34, %v33, 0
      %81 = vmatprep.subr.bf16.mxu0 0
      %82 = vmatpush1.bf16.xpose.msra.mxu0 0
      %83 = vmatprep.subr.bf16.mxu0 0
      %84 = vmatpush1.bf16.xpose.msra.mxu0 0
      %85 = vmatprep.subr.bf16.mxu0 0
      %86 = vmatpush1.bf16.xpose.msra.mxu0 0
      %87 = vmatprep.subr.bf16.mxu0 0
      %88 = vmatpush1.bf16.xpose.msra.mxu0 0
      %89 = vmatprep.subr.bf16.mxu0 0
      %90 = vmatpush1.bf16.xpose.msra.mxu0 0
      %91 = vmatprep.subr.bf16.mxu0 0
      %92 = vmatpush1.bf16.xpose.msra.mxu0 0
      %93 = vmatprep.subr.bf16.mxu0 0
      %94 = vmatpush1.bf16.xpose.msra.mxu0 0
      %95 = vmatprep.subr.bf16.mxu0 0
      %96 = vmatpush1.bf16.xpose.msra.mxu0 %v79
      %97 = vmatprep.subr.bf16.mxu0 0
      %98 = vmatpush2.bf16.xpose.msra.mxu0 0
      %99 = vmatprep.subr.bf16.mxu0 0
      %100 = vmatpush2.bf16.xpose.msra.mxu0 0
      %101 = vmatprep.subr.bf16.mxu0 0
      %102 = vmatpush2.bf16.xpose.msra.mxu0 0
      %103 = vmatprep.subr.bf16.mxu0 0
      %104 = vmatpush2.bf16.xpose.msra.mxu0 0
      %105 = vmatprep.subr.bf16.mxu0 0
      %106 = vmatpush2.bf16.xpose.msra.mxu0 0
      %107 = vmatprep.subr.bf16.mxu0 0
      %108 = vmatpush2.bf16.xpose.msra.mxu0 0
      %109 = vmatprep.subr.bf16.mxu0 0
      %110 = vmatpush2.bf16.xpose.msra.mxu0 0
      %111 = vmatprep.subr.bf16.mxu0 0
      %112 = vmatpush2.bf16.xpose.msra.mxu0 0
      %113 = vmatprep.mubr.bf16.mxu0 0
      %114 = vmatmul.mubr.bf16.gmra.mxu0 %v79
      %v115 = vpop.f32.mrf.mxu0
      %v116 = vadd.f32 0.0, %v115
      %v117 = vpop.f32.mrf.mxu0
      %v118 = vpop.f32.mrf.mxu0
      %v119 = vpop.f32.mrf.mxu0
      %120 = vdwg.mxu0
      %v121 = vmul.f32 %v73, 0.17677669
      %v122 = vmul.f32 %v116, 0.17677669
      %v123 = vlaneseq
      %v124 = vshrl.u32 %v123, 7
      %v125 = vlaneseq
      %v126 = vand.u32 %v125, 127
      %vm127 = vcmp.le.s32.totalorder %v126, %v124
      %v128 = vsel %vm127, 1, 0
      %vm129 = vcmp.eq.s32.totalorder %v128, 1
      %v130 = vsel %vm129, %v121, -inf
      %v131 = vsel %vm129, %v122, -inf
      %vm132 = vcmask 64512
      %v133 = vsel %vm132, %v130, -inf
      %134 = vmax.xlane.f32.xlu0 %v133
      %v135 = vpop.xlane.xlu0 %134
      %v136 = vsel %vm132, %v131, -inf
      %137 = vmax.xlane.f32.xlu0 %v136
      %v138 = vpop.xlane.xlu0 %137
      %v139 = vsub.f32 %v130, %v135
      %v140 = vsub.f32 %v131, %v138
      %v141 = vmul.f32 %v139, 1.442695
      %v142 = vpow.pop %v141
      %v143 = vmul.f32 %v140, 1.442695
      %v144 = vpow.pop %v143
      %v145 = vsel %vm132, %v142, 0.0
      %146 = vadd.xlane.f32.xlu0 %v145
      %v147 = vpop.xlane.xlu0 %146
      %v148 = vsel %vm132, %v144, 0.0
      %149 = vadd.xlane.f32.xlu0 %v148
      %v150 = vpop.xlane.xlu0 %149
      %v151 = vrcp.pop %v147
      %v152 = vrcp.pop %v150
      %v153 = vmul.f32 %v142, %v151
      %v154 = vmul.f32 %v144, %v152
      %v155 = vpack.c.bf16 %v153, %v153
      %v156 = vpack.c.bf16 %v154, %v154
      %v158 = vsel %vm132, %v155, 0
      %vm160 = vcmask 1043456
      %v161 = vsel %vm160, %v32, 0
      %163 = vmatprep.subr.bf16.mxu0 0
      %164 = vmatpush1.bf16.msra.mxu0 0
      %165 = vmatprep.subr.bf16.mxu0 0
      %166 = vmatpush1.bf16.msra.mxu0 0
      %167 = vmatprep.subr.bf16.mxu0 0
      %168 = vmatpush1.bf16.msra.mxu0 0
      %169 = vmatprep.subr.bf16.mxu0 0
      %170 = vmatpush1.bf16.msra.mxu0 0
      %171 = vmatprep.subr.bf16.mxu0 0
      %172 = vmatpush1.bf16.msra.mxu0 0
      %173 = vmatprep.subr.bf16.mxu0 0
      %174 = vmatpush1.bf16.msra.mxu0 0
      %175 = vmatprep.subr.bf16.mxu0 0
      %176 = vmatpush1.bf16.msra.mxu0 0
      %177 = vmatprep.subr.bf16.mxu0 0
      %178 = vmatpush1.bf16.msra.mxu0 %v161
      %179 = vmatprep.subr.bf16.mxu0 0
      %180 = vmatpush2.bf16.msra.mxu0 0
      %181 = vmatprep.subr.bf16.mxu0 0
      %182 = vmatpush2.bf16.msra.mxu0 0
      %183 = vmatprep.subr.bf16.mxu0 0
      %184 = vmatpush2.bf16.msra.mxu0 0
      %185 = vmatprep.subr.bf16.mxu0 0
      %186 = vmatpush2.bf16.msra.mxu0 0
      %187 = vmatprep.subr.bf16.mxu0 0
      %188 = vmatpush2.bf16.msra.mxu0 0
      %189 = vmatprep.subr.bf16.mxu0 0
      %190 = vmatpush2.bf16.msra.mxu0 0
      %191 = vmatprep.subr.bf16.mxu0 0
      %192 = vmatpush2.bf16.msra.mxu0 0
      %193 = vmatprep.subr.bf16.mxu0 0
      %194 = vmatpush2.bf16.msra.mxu0 0
      %195 = vmatprep.mubr.bf16.mxu0 0
      %196 = vmatmul.mubr.bf16.gmra.mxu0 %v158
      %v197 = vpop.f32.mrf.mxu0
      %v198 = vadd.f32 0.0, %v197
      %v199 = vpop.f32.mrf.mxu0
      %v200 = vpop.f32.mrf.mxu0
      %v201 = vpop.f32.mrf.mxu0
      %202 = vdwg.mxu0
      %v204 = vsel %vm132, %v156, 0
      %v206 = vsel %vm160, %v33, 0
      %208 = vmatprep.subr.bf16.mxu0 0
      %209 = vmatpush1.bf16.msra.mxu0 0
      %210 = vmatprep.subr.bf16.mxu0 0
      %211 = vmatpush1.bf16.msra.mxu0 0
      %212 = vmatprep.subr.bf16.mxu0 0
      %213 = vmatpush1.bf16.msra.mxu0 0
      %214 = vmatprep.subr.bf16.mxu0 0
      %215 = vmatpush1.bf16.msra.mxu0 0
      %216 = vmatprep.subr.bf16.mxu0 0
      %217 = vmatpush1.bf16.msra.mxu0 0
      %218 = vmatprep.subr.bf16.mxu0 0
      %219 = vmatpush1.bf16.msra.mxu0 0
      %220 = vmatprep.subr.bf16.mxu0 0
      %221 = vmatpush1.bf16.msra.mxu0 0
      %222 = vmatprep.subr.bf16.mxu0 0
      %223 = vmatpush1.bf16.msra.mxu0 %v206
      %224 = vmatprep.subr.bf16.mxu0 0
      %225 = vmatpush2.bf16.msra.mxu0 0
      %226 = vmatprep.subr.bf16.mxu0 0
      %227 = vmatpush2.bf16.msra.mxu0 0
      %228 = vmatprep.subr.bf16.mxu0 0
      %229 = vmatpush2.bf16.msra.mxu0 0
      %230 = vmatprep.subr.bf16.mxu0 0
      %231 = vmatpush2.bf16.msra.mxu0 0
      %232 = vmatprep.subr.bf16.mxu0 0
      %233 = vmatpush2.bf16.msra.mxu0 0
      %234 = vmatprep.subr.bf16.mxu0 0
      %235 = vmatpush2.bf16.msra.mxu0 0
      %236 = vmatprep.subr.bf16.mxu0 0
      %237 = vmatpush2.bf16.msra.mxu0 0
      %238 = vmatprep.subr.bf16.mxu0 0
      %239 = vmatpush2.bf16.msra.mxu0 0
      %240 = vmatprep.mubr.bf16.mxu0 0
      %241 = vmatmul.mubr.bf16.gmra.mxu0 %v204
      %v242 = vpop.f32.mrf.mxu0
      %v243 = vadd.f32 0.0, %v242
      %v244 = vpop.f32.mrf.mxu0
      %v245 = vpop.f32.mrf.mxu0
      %v246 = vpop.f32.mrf.mxu0
      %247 = vdwg.mxu0
      %v248 = vunpack.c.l.bf16 %v32
      %v249 = vunpack.c.l.bf16 %v33
      %v250 = vadd.f32 %v248, %v198
      %v251 = vadd.f32 %v249, %v243
      %v252 = vpack.c.bf16 %v251, %v250
      %v253 = vld [vmem:[%s1] sm:$0xf]
      %v254 = vld [vmem:[%s1 + $0x4] sm:$0xf]
      %v255 = vld [vmem:[%s1 + $0x8] sm:$0xf]
      %v256 = vld [vmem:[%s1 + $0xc] sm:$0xf]
      %v257 = vld [vmem:[%s2] sm:$0x1]
      %v259 = vlaneseq
      %v260 = vshrl.u32 %v259, 7
      %v261 = vsub.s32 0, %v260
      %v262 = vrot.slane %v257, %v261
      %v268 = vunpack.c.l.b16 %v253
      %v269 = vunpack.c.l.b16 %v254
      %v270 = vunpack.c.l.b16 %v255
      %v271 = vunpack.c.l.b16 %v256
      %v272 = vpack.c.b16 %v269, %v268
      %v273 = vpack.c.b16 %v271, %v270
      %v277 = vsel %vm34, %v252, 0
      %279 = vmatprep.subr.bf16.mxu0 0
      %280 = vmatpush1.bf16.msra.mxu0 0
      %281 = vmatprep.subr.bf16.mxu0 0
      %282 = vmatpush1.bf16.msra.mxu0 0
      %283 = vmatprep.subr.bf16.mxu0 0
      %284 = vmatpush1.bf16.msra.mxu0 0
      %285 = vmatprep.subr.bf16.mxu0 0
      %286 = vmatpush1.bf16.msra.mxu0 0
      %287 = vmatprep.subr.bf16.mxu0 0
      %288 = vmatpush1.bf16.msra.mxu0 0
      %289 = vmatprep.subr.bf16.mxu0 0
      %290 = vmatpush1.bf16.msra.mxu0 0
      %291 = vmatprep.subr.bf16.mxu0 0
      %292 = vmatpush1.bf16.msra.mxu0 %v273
      %293 = vmatprep.subr.bf16.mxu0 0
      %294 = vmatpush1.bf16.msra.mxu0 %v272
      %295 = vmatprep.subr.bf16.mxu0 0
      %296 = vmatpush2.bf16.msra.mxu0 0
      %297 = vmatprep.subr.bf16.mxu0 0
      %298 = vmatpush2.bf16.msra.mxu0 0
      %299 = vmatprep.subr.bf16.mxu0 0
      %300 = vmatpush2.bf16.msra.mxu0 0
      %301 = vmatprep.subr.bf16.mxu0 0
      %302 = vmatpush2.bf16.msra.mxu0 0
      %303 = vmatprep.subr.bf16.mxu0 0
      %304 = vmatpush2.bf16.msra.mxu0 0
      %305 = vmatprep.subr.bf16.mxu0 0
      %306 = vmatpush2.bf16.msra.mxu0 0
      %307 = vmatprep.subr.bf16.mxu0 0
      %308 = vmatpush2.bf16.msra.mxu0 0
      %309 = vmatprep.subr.bf16.mxu0 0
      %310 = vmatpush2.bf16.msra.mxu0 0
      %311 = vmatprep.mubr.bf16.mxu0 0
      %312 = vmatmul.mubr.bf16.gmra.mxu0 %v277
      %v313 = vpop.f32.mrf.mxu0
      %v314 = vadd.f32 %v262, %v313
      %v315 = vpop.f32.mrf.mxu0
      %v316 = vpop.f32.mrf.mxu0
      %v317 = vadd.f32 %v262, %v316
      %v318 = vpop.f32.mrf.mxu0
      %319 = vdwg.mxu0
      %v320 = vtanh.pop %v314
      %v321 = vtanh.pop %v317
      %v322 = vpack.c.bf16 %v321, %v320
      %v323 = vld [vmem:[%s3] sm:$0xf]
      %v324 = vld [vmem:[%s3 + $0x4] sm:$0xf]
      %v325 = vld [vmem:[%s3 + $0x8] sm:$0xf]
      %v326 = vld [vmem:[%s3 + $0xc] sm:$0xf]
      %v327 = vld [vmem:[%s3 + $0x10] sm:$0xf]
      %v328 = vld [vmem:[%s3 + $0x14] sm:$0xf]
      %v329 = vld [vmem:[%s3 + $0x18] sm:$0xf]
      %v330 = vld [vmem:[%s3 + $0x1c] sm:$0xf]
      %v339 = vunpack.c.l.b16 %v323
      %v340 = vunpack.c.l.b16 %v324
      %v341 = vunpack.c.l.b16 %v325
      %v342 = vunpack.c.l.b16 %v326
      %v343 = vunpack.c.l.b16 %v327
      %v344 = vunpack.c.l.b16 %v328
      %v345 = vunpack.c.l.b16 %v329
      %v346 = vunpack.c.l.b16 %v330
      %v347 = vpack.c.b16 %v340, %v339
      %v348 = vpack.c.b16 %v342, %v341
      %v349 = vpack.c.b16 %v344, %v343
      %v350 = vpack.c.b16 %v346, %v345
      %vm355 = vcmask 523264
      %v357 = vsel %vm355, %v322, 0
      %359 = vmatprep.subr.bf16.mxu0 0
      %360 = vmatpush1.bf16.msra.mxu0 0
      %361 = vmatprep.subr.bf16.mxu0 0
      %362 = vmatpush1.bf16.msra.mxu0 0
      %363 = vmatprep.subr.bf16.mxu0 0
      %364 = vmatpush1.bf16.msra.mxu0 0
      %365 = vmatprep.subr.bf16.mxu0 0
      %366 = vmatpush1.bf16.msra.mxu0 0
      %367 = vmatprep.subr.bf16.mxu0 0
      %368 = vmatpush1.bf16.msra.mxu0 %v350
      %369 = vmatprep.subr.bf16.mxu0 0
      %370 = vmatpush1.bf16.msra.mxu0 %v349
      %371 = vmatprep.subr.bf16.mxu0 0
      %372 = vmatpush1.bf16.msra.mxu0 %v348
      %373 = vmatprep.subr.bf16.mxu0 0
      %374 = vmatpush1.bf16.msra.mxu0 %v347
      %375 = vmatprep.subr.bf16.mxu0 0
      %376 = vmatpush2.bf16.msra.mxu0 0
      %377 = vmatprep.subr.bf16.mxu0 0
      %378 = vmatpush2.bf16.msra.mxu0 0
      %379 = vmatprep.subr.bf16.mxu0 0
      %380 = vmatpush2.bf16.msra.mxu0 0
      %381 = vmatprep.subr.bf16.mxu0 0
      %382 = vmatpush2.bf16.msra.mxu0 0
      %383 = vmatprep.subr.bf16.mxu0 0
      %384 = vmatpush2.bf16.msra.mxu0 0
      %385 = vmatprep.subr.bf16.mxu0 0
      %386 = vmatpush2.bf16.msra.mxu0 0
      %387 = vmatprep.subr.bf16.mxu0 0
      %388 = vmatpush2.bf16.msra.mxu0 0
      %389 = vmatprep.subr.bf16.mxu0 0
      %390 = vmatpush2.bf16.msra.mxu0 0
      %391 = vmatprep.mubr.bf16.mxu0 0
      %392 = vmatmul.mubr.bf16.gmra.mxu0 %v357
      %v393 = vpop.f32.mrf.mxu0
      %v394 = vadd.f32 0.0, %v393
      %v395 = vpop.f32.mrf.mxu0
      %v396 = vpop.f32.mrf.mxu0
      %v397 = vadd.f32 0.0, %v396
      %v398 = vpop.f32.mrf.mxu0
      %399 = vdwg.mxu0
      %v400 = vadd.f32 %v250, %v394
      %v401 = vadd.f32 %v251, %v397
      %v402 = vld [vmem:[%s4] sm:$0x1]
      %v404 = vlaneseq
      %v405 = vshrl.u32 %v404, 7
      %v406 = vsub.s32 0, %v405
      %v407 = vrot.slane %v402, %v406
      %v409 = vadd.f32 %v400, %v407
      %v410 = vadd.f32 %v401, %v407
      %411 = vst.msk [vmem:[#allocation2] sm:$0xff] %vm34, %v409
      %412 = vst.msk [vmem:[#allocation2 + $0x8] sm:$0xff] %vm34, %v410
    $region33: #{tpu_custom_call.1} parent=1 // pred_fallthru
      _
    %v413 = vld [vmem:[#allocation2] sm:$0xff]
    %v414 = vld [vmem:[#allocation2 + $0x8] sm:$0xff]
    %v415 = vpack.c.bf16 %v414, %v413
    %v416 = vld [vmem:[%s5] sm:$0xf]
    %v417 = vld [vmem:[%s5 + $0x4] sm:$0xf]
    %v418 = vld [vmem:[%s5 + $0x8] sm:$0xf]
    %v419 = vld [vmem:[%s5 + $0xc] sm:$0xf]
    %v420 = vld [vmem:[%s6] sm:$0x1]
    %v422 = vlaneseq
    %v423 = vshrl.u32 %v422, 7
    %v424 = vsub.s32 0, %v423
    %v425 = vrot.slane %v420, %v424
    %v431 = vunpack.c.l.b16 %v416
    %v432 = vunpack.c.l.b16 %v417
    %v433 = vunpack.c.l.b16 %v418
    %v434 = vunpack.c.l.b16 %v419
    %v435 = vpack.c.b16 %v432, %v431
    %v436 = vpack.c.b16 %v434, %v433
    %vm439 = vcmask 261120
    %v441 = vsel %vm439, %v415, 0
    %443 = vmatprep.subr.bf16.mxu0 0
    %444 = vmatpush1.bf16.msra.mxu0 0
    %445 = vmatprep.subr.bf16.mxu0 0
    %446 = vmatpush1.bf16.msra.mxu0 0
    %447 = vmatprep.subr.bf16.mxu0 0
    %448 = vmatpush1.bf16.msra.mxu0 0
    %449 = vmatprep.subr.bf16.mxu0 0
    %450 = vmatpush1.bf16.msra.mxu0 0
    %451 = vmatprep.subr.bf16.mxu0 0
    %452 = vmatpush1.bf16.msra.mxu0 0
    %453 = vmatprep.subr.bf16.mxu0 0
    %454 = vmatpush1.bf16.msra.mxu0 0
    %455 = vmatprep.subr.bf16.mxu0 0
    %456 = vmatpush1.bf16.msra.mxu0 %v436
    %457 = vmatprep.subr.bf16.mxu0 0
    %458 = vmatpush1.bf16.msra.mxu0 %v435
    %459 = vmatprep.subr.bf16.mxu0 0
    %460 = vmatpush2.bf16.msra.mxu0 0
    %461 = vmatprep.subr.bf16.mxu0 0
    %462 = vmatpush2.bf16.msra.mxu0 0
    %463 = vmatprep.subr.bf16.mxu0 0
    %464 = vmatpush2.bf16.msra.mxu0 0
    %465 = vmatprep.subr.bf16.mxu0 0
    %466 = vmatpush2.bf16.msra.mxu0 0
    %467 = vmatprep.subr.bf16.mxu0 0
    %468 = vmatpush2.bf16.msra.mxu0 0
    %469 = vmatprep.subr.bf16.mxu0 0
    %470 = vmatpush2.bf16.msra.mxu0 0
    %471 = vmatprep.subr.bf16.mxu0 0
    %472 = vmatpush2.bf16.msra.mxu0 0
    %473 = vmatprep.subr.bf16.mxu0 0
    %474 = vmatpush2.bf16.msra.mxu0 0
    %475 = vmatprep.mubr.bf16.mxu0 0
    %476 = vmatmul.mubr.bf16.gmra.mxu0 %v441
    %v477 = vpop.f32.mrf.mxu0
    %v478 = vadd.f32 %v425, %v477
    %v479 = vpop.f32.mrf.mxu0
    %v480 = vpop.f32.mrf.mxu0
    %v481 = vadd.f32 %v425, %v480
    %v482 = vpop.f32.mrf.mxu0
    %483 = vdwg.mxu0
    %484 = vst [vmem:[#allocation3] sm:$0xff] %v478
    %485 = vst [vmem:[#allocation3 + $0x8] sm:$0xff] %v481
    // Predicated region
    $region34: #{tpu_custom_call.1} parent=1 // pred_check
      _
    $region35: #{tpu_custom_call.1} parent=1 // pred_check_branch
      %487 = sbr.rel (0) target = $region37
    $region36: #{tpu_custom_call.1} parent=1 // pred_region
      %s489 = ssub.s32 256, 256
      %490 = vsyncadd [#allocation4], %s489
      %s491 = sshll.u32 [#allocation3], 4
      %s492 = int_to_ptr.vmem [resolvable:$true] %s491
      %497 = dma.vmem_to_hbm [thread:$0]  %s492, 256, %s7, [#allocation4], 128, 128, 8
    $region37: #{tpu_custom_call.1} parent=1 // pred_fallthru
      _
    // Predicated region
    $region38: #{tpu_custom_call.1} parent=1 // pred_check
      _
    $region39: #{tpu_custom_call.1} parent=1 // pred_check_branch
      %499 = sbr.rel (0) target = $region41
    $region40: #{tpu_custom_call.1} parent=1 // pred_region
      %500 = dma.done [#allocation4], 256
    $region41: #{tpu_custom_call.1} parent=1 // pred_fallthru
      _
    %501 = vsyncpa [#allocation4], 1

// kernel: tpu_custom_call.1
$region0: #{tpu_custom_call.1}
  #allocation0 [shape = 'u32[]', space=smem, size = 0x4, offset = 0x4, fixed_abs, tag = 'smem constant byte address 0x4 - core index']
  #allocation1 [shape = 'u32[144,128]{1,0:T(1,128)}', space=vmem, size = 0x12000, scoped, tag = 'internal scratch']
  #allocation2 [shape = 'f32[16,32]{1,0:T(8,128)}', space=vmem, size = 0x2000, scoped, tag = 'scratch operand']
  %s0 = inlined_call_operand.vmem [shape: bf16[2,8,32], index: 0, kind: input, shape index: {}]
  %s1 = inlined_call_operand.vmem [shape: bf16[32,64], index: 1, kind: input, shape index: {}]
  %s2 = inlined_call_operand.vmem [shape: f32[1,64], index: 2, kind: input, shape index: {}]
  %s3 = inlined_call_operand.vmem [shape: bf16[64,32], index: 3, kind: input, shape index: {}]
  %s4 = inlined_call_operand.vmem [shape: f32[1,32], index: 4, kind: input, shape index: {}]
  %s5 = inlined_call_operand.vmem [shape: bf16[32,128], index: 5, kind: input, shape index: {}]
  %s6 = inlined_call_operand.vmem [shape: f32[1,128], index: 6, kind: input, shape index: {}]
  %s7 = inlined_call_operand.hbm [shape: f32[16,128], index: 7, kind: output, shape index: {}]
  %s8 = sld [smem:[#allocation0]]
  $region42: #{tpu_custom_call.1} parent=0
    _
  %s10 = ssub.s32 1, %s8
  %s11 = scalar_select 0, %s10, %s8
  $region1: #{tpu_custom_call.1} parent=0
    #allocation3 [shape = 'u8[8192]{0}', space=vmem, size = 0x2000, scoped, tag = 'output window, operand 0, single buffered']
    #allocation4 [shape = 's32[1]{0}', space=sflag, size = 0x4, scoped, tag = 'scoped memory for tpu_custom_call.1']
    %12 = vsyncpa [#allocation4], 0
    // Predicated region
    $region2: #{tpu_custom_call.1} parent=1 // pred_check
      _
    $region3: #{tpu_custom_call.1} parent=1 // pred_check_branch
      %14 = sbr.rel (0) target = $region5
    $region4: #{tpu_custom_call.1} parent=1 // pred_region
      _
    $region5: #{tpu_custom_call.1} parent=1 // pred_fallthru
      _
    // Predicated region
    $region6: #{tpu_custom_call.1} parent=1 // pred_check
      _
    $region7: #{tpu_custom_call.1} parent=1 // pred_check_branch
      %16 = sbr.rel (0) target = $region9
    $region8: #{tpu_custom_call.1} parent=1 // pred_region
      _
    $region9: #{tpu_custom_call.1} parent=1 // pred_fallthru
      _
    // Predicated region
    $region10: #{tpu_custom_call.1} parent=1 // pred_check
      _
    $region11: #{tpu_custom_call.1} parent=1 // pred_check_branch
      %18 = sbr.rel (0) target = $region13
    $region12: #{tpu_custom_call.1} parent=1 // pred_region
      _
    $region13: #{tpu_custom_call.1} parent=1 // pred_fallthru
      _
    // Predicated region
    $region14: #{tpu_custom_call.1} parent=1 // pred_check
      _
    $region15: #{tpu_custom_call.1} parent=1 // pred_check_branch
      %20 = sbr.rel (0) target = $region17
    $region16: #{tpu_custom_call.1} parent=1 // pred_region
      _
    $region17: #{tpu_custom_call.1} parent=1 // pred_fallthru
      _
    // Predicated region
    $region18: #{tpu_custom_call.1} parent=1 // pred_check
      _
    $region19: #{tpu_custom_call.1} parent=1 // pred_check_branch
      %22 = sbr.rel (0) target = $region21
    $region20: #{tpu_custom_call.1} parent=1 // pred_region
      _
    $region21: #{tpu_custom_call.1} parent=1 // pred_fallthru
      _
    // Predicated region
    $region22: #{tpu_custom_call.1} parent=1 // pred_check
      _
    $region23: #{tpu_custom_call.1} parent=1 // pred_check_branch
      %24 = sbr.rel (0) target = $region25
    $region24: #{tpu_custom_call.1} parent=1 // pred_region
      _
    $region25: #{tpu_custom_call.1} parent=1 // pred_fallthru
      _
    // Predicated region
    $region26: #{tpu_custom_call.1} parent=1 // pred_check
      _
    $region27: #{tpu_custom_call.1} parent=1 // pred_check_branch
      %26 = sbr.rel (0) target = $region29
    $region28: #{tpu_custom_call.1} parent=1 // pred_region
      _
    $region29: #{tpu_custom_call.1} parent=1 // pred_fallthru
      _
    %p28 = scmp.eq.s32.totalorder 0, 0
    // Predicated region
    $region30: #{tpu_custom_call.1} parent=1 // pred_check
      %p29 = pneg %p28
    $region31: #{tpu_custom_call.1} parent=1 // pred_check_branch
      %31 = sbr.rel (%p29) target = $region33
    $region32: #{tpu_custom_call.1} parent=1 // pred_region
      %v32 = vld [vmem:[%s0] sm:$0xf]
      %v33 = vld [vmem:[%s0 + $0x4] sm:$0xf]
      %vm34 = vcmask 261120
      %v36 = vsel %vm34, %v32, 0
      %38 = vmatprep.subr.bf16.mxu0 0
      %39 = vmatpush1.bf16.xpose.msra.mxu0 0
      %40 = vmatprep.subr.bf16.mxu0 0
      %41 = vmatpush1.bf16.xpose.msra.mxu0 0
      %42 = vmatprep.subr.bf16.mxu0 0
      %43 = vmatpush1.bf16.xpose.msra.mxu0 0
      %44 = vmatprep.subr.bf16.mxu0 0
      %45 = vmatpush1.bf16.xpose.msra.mxu0 0
      %46 = vmatprep.subr.bf16.mxu0 0
      %47 = vmatpush1.bf16.xpose.msra.mxu0 0
      %48 = vmatprep.subr.bf16.mxu0 0
      %49 = vmatpush1.bf16.xpose.msra.mxu0 0
      %50 = vmatprep.subr.bf16.mxu0 0
      %51 = vmatpush1.bf16.xpose.msra.mxu0 0
      %52 = vmatprep.subr.bf16.mxu0 0
      %53 = vmatpush1.bf16.xpose.msra.mxu0 %v36
      %54 = vmatprep.subr.bf16.mxu0 0
      %55 = vmatpush2.bf16.xpose.msra.mxu0 0
      %56 = vmatprep.subr.bf16.mxu0 0
      %57 = vmatpush2.bf16.xpose.msra.mxu0 0
      %58 = vmatprep.subr.bf16.mxu0 0
      %59 = vmatpush2.bf16.xpose.msra.mxu0 0
      %60 = vmatprep.subr.bf16.mxu0 0
      %61 = vmatpush2.bf16.xpose.msra.mxu0 0
      %62 = vmatprep.subr.bf16.mxu0 0
      %63 = vmatpush2.bf16.xpose.msra.mxu0 0
      %64 = vmatprep.subr.bf16.mxu0 0
      %65 = vmatpush2.bf16.xpose.msra.mxu0 0
      %66 = vmatprep.subr.bf16.mxu0 0
      %67 = vmatpush2.bf16.xpose.msra.mxu0 0
      %68 = vmatprep.subr.bf16.mxu0 0
      %69 = vmatpush2.bf16.xpose.msra.mxu0 0
      %70 = vmatprep.mubr.bf16.mxu0 0
      %71 = vmatmul.mubr.bf16.gmra.mxu0 %v36
      %v72 = vpop.f32.mrf.mxu0
      %v73 = vadd.f32 0.0, %v72
      %v74 = vpop.f32.mrf.mxu0
      %v75 = vpop.f32.mrf.mxu0
      %v76 = vpop.f32.mrf.mxu0
      %77 = vdwg.mxu0
      %v79 = vsel %vm34, %v33, 0
      %81 = vmatprep.subr.bf16.mxu0 0
      %82 = vmatpush1.bf16.xpose.msra.mxu0 0
      %83 = vmatprep.subr.bf16.mxu0 0
      %84 = vmatpush1.bf16.xpose.msra.mxu0 0
      %85 = vmatprep.subr.bf16.mxu0 0
      %86 = vmatpush1.bf16.xpose.msra.mxu0 0
      %87 = vmatprep.subr.bf16.mxu0 0
      %88 = vmatpush1.bf16.xpose.msra.mxu0 0
      %89 = vmatprep.subr.bf16.mxu0 0
      %90 = vmatpush1.bf16.xpose.msra.mxu0 0
      %91 = vmatprep.subr.bf16.mxu0 0
      %92 = vmatpush1.bf16.xpose.msra.mxu0 0
      %93 = vmatprep.subr.bf16.mxu0 0
      %94 = vmatpush1.bf16.xpose.msra.mxu0 0
      %95 = vmatprep.subr.bf16.mxu0 0
      %96 = vmatpush1.bf16.xpose.msra.mxu0 %v79
      %97 = vmatprep.subr.bf16.mxu0 0
      %98 = vmatpush2.bf16.xpose.msra.mxu0 0
      %99 = vmatprep.subr.bf16.mxu0 0
      %100 = vmatpush2.bf16.xpose.msra.mxu0 0
      %101 = vmatprep.subr.bf16.mxu0 0
      %102 = vmatpush2.bf16.xpose.msra.mxu0 0
      %103 = vmatprep.subr.bf16.mxu0 0
      %104 = vmatpush2.bf16.xpose.msra.mxu0 0
      %105 = vmatprep.subr.bf16.mxu0 0
      %106 = vmatpush2.bf16.xpose.msra.mxu0 0
      %107 = vmatprep.subr.bf16.mxu0 0
      %108 = vmatpush2.bf16.xpose.msra.mxu0 0
      %109 = vmatprep.subr.bf16.mxu0 0
      %110 = vmatpush2.bf16.xpose.msra.mxu0 0
      %111 = vmatprep.subr.bf16.mxu0 0
      %112 = vmatpush2.bf16.xpose.msra.mxu0 0
      %113 = vmatprep.mubr.bf16.mxu0 0
      %114 = vmatmul.mubr.bf16.gmra.mxu0 %v79
      %v115 = vpop.f32.mrf.mxu0
      %v116 = vadd.f32 0.0, %v115
      %v117 = vpop.f32.mrf.mxu0
      %v118 = vpop.f32.mrf.mxu0
      %v119 = vpop.f32.mrf.mxu0
      %120 = vdwg.mxu0
      %v121 = vmul.f32 %v73, 0.17677669
      %v122 = vmul.f32 %v116, 0.17677669
      %v123 = vlaneseq
      %v124 = vshrl.u32 %v123, 7
      %v125 = vlaneseq
      %v126 = vand.u32 %v125, 127
      %vm127 = vcmp.le.s32.totalorder %v126, %v124
      %v128 = vsel %vm127, 1, 0
      %vm129 = vcmp.eq.s32.totalorder %v128, 1
      %v130 = vsel %vm129, %v121, -inf
      %v131 = vsel %vm129, %v122, -inf
      %vm132 = vcmask 64512
      %v133 = vsel %vm132, %v130, -inf
      %134 = vmax.xlane.f32.xlu0 %v133
      %v135 = vpop.xlane.xlu0 %134
      %v136 = vsel %vm132, %v131, -inf
      %137 = vmax.xlane.f32.xlu0 %v136
      %v138 = vpop.xlane.xlu0 %137
      %v139 = vsub.f32 %v130, %v135
      %v140 = vsub.f32 %v131, %v138
      %v141 = vmul.f32 %v139, 1.442695
      %v142 = vpow.pop %v141
      %v143 = vmul.f32 %v140, 1.442695
      %v144 = vpow.pop %v143
      %v145 = vsel %vm132, %v142, 0.0
      %146 = vadd.xlane.f32.xlu0 %v145
      %v147 = vpop.xlane.xlu0 %146
      %v148 = vsel %vm132, %v144, 0.0
      %149 = vadd.xlane.f32.xlu0 %v148
      %v150 = vpop.xlane.xlu0 %149
      %v151 = vrcp.pop %v147
      %v152 = vrcp.pop %v150
      %v153 = vmul.f32 %v142, %v151
      %v154 = vmul.f32 %v144, %v152
      %v155 = vpack.c.bf16 %v153, %v153
      %v156 = vpack.c.bf16 %v154, %v154
      %v158 = vsel %vm132, %v155, 0
      %vm160 = vcmask 1043456
      %v161 = vsel %vm160, %v32, 0
      %163 = vmatprep.subr.bf16.mxu0 0
      %164 = vmatpush1.bf16.msra.mxu0 0
      %165 = vmatprep.subr.bf16.mxu0 0
      %166 = vmatpush1.bf16.msra.mxu0 0
      %167 = vmatprep.subr.bf16.mxu0 0
      %168 = vmatpush1.bf16.msra.mxu0 0
      %169 = vmatprep.subr.bf16.mxu0 0
      %170 = vmatpush1.bf16.msra.mxu0 0
      %171 = vmatprep.subr.bf16.mxu0 0
      %172 = vmatpush1.bf16.msra.mxu0 0
      %173 = vmatprep.subr.bf16.mxu0 0
      %174 = vmatpush1.bf16.msra.mxu0 0
      %175 = vmatprep.subr.bf16.mxu0 0
      %176 = vmatpush1.bf16.msra.mxu0 0
      %177 = vmatprep.subr.bf16.mxu0 0
      %178 = vmatpush1.bf16.msra.mxu0 %v161
      %179 = vmatprep.subr.bf16.mxu0 0
      %180 = vmatpush2.bf16.msra.mxu0 0
      %181 = vmatprep.subr.bf16.mxu0 0
      %182 = vmatpush2.bf16.msra.mxu0 0
      %183 = vmatprep.subr.bf16.mxu0 0
      %184 = vmatpush2.bf16.msra.mxu0 0
      %185 = vmatprep.subr.bf16.mxu0 0
      %186 = vmatpush2.bf16.msra.mxu0 0
      %187 = vmatprep.subr.bf16.mxu0 0
      %188 = vmatpush2.bf16.msra.mxu0 0
      %189 = vmatprep.subr.bf16.mxu0 0
      %190 = vmatpush2.bf16.msra.mxu0 0
      %191 = vmatprep.subr.bf16.mxu0 0
      %192 = vmatpush2.bf16.msra.mxu0 0
      %193 = vmatprep.subr.bf16.mxu0 0
      %194 = vmatpush2.bf16.msra.mxu0 0
      %195 = vmatprep.mubr.bf16.mxu0 0
      %196 = vmatmul.mubr.bf16.gmra.mxu0 %v158
      %v197 = vpop.f32.mrf.mxu0
      %v198 = vadd.f32 0.0, %v197
      %v199 = vpop.f32.mrf.mxu0
      %v200 = vpop.f32.mrf.mxu0
      %v201 = vpop.f32.mrf.mxu0
      %202 = vdwg.mxu0
      %v204 = vsel %vm132, %v156, 0
      %v206 = vsel %vm160, %v33, 0
      %208 = vmatprep.subr.bf16.mxu0 0
      %209 = vmatpush1.bf16.msra.mxu0 0
      %210 = vmatprep.subr.bf16.mxu0 0
      %211 = vmatpush1.bf16.msra.mxu0 0
      %212 = vmatprep.subr.bf16.mxu0 0
      %213 = vmatpush1.bf16.msra.mxu0 0
      %214 = vmatprep.subr.bf16.mxu0 0
      %215 = vmatpush1.bf16.msra.mxu0 0
      %216 = vmatprep.subr.bf16.mxu0 0
      %217 = vmatpush1.bf16.msra.mxu0 0
      %218 = vmatprep.subr.bf16.mxu0 0
      %219 = vmatpush1.bf16.msra.mxu0 0
      %220 = vmatprep.subr.bf16.mxu0 0
      %221 = vmatpush1.bf16.msra.mxu0 0
      %222 = vmatprep.subr.bf16.mxu0 0
      %223 = vmatpush1.bf16.msra.mxu0 %v206
      %224 = vmatprep.subr.bf16.mxu0 0
      %225 = vmatpush2.bf16.msra.mxu0 0
      %226 = vmatprep.subr.bf16.mxu0 0
      %227 = vmatpush2.bf16.msra.mxu0 0
      %228 = vmatprep.subr.bf16.mxu0 0
      %229 = vmatpush2.bf16.msra.mxu0 0
      %230 = vmatprep.subr.bf16.mxu0 0
      %231 = vmatpush2.bf16.msra.mxu0 0
      %232 = vmatprep.subr.bf16.mxu0 0
      %233 = vmatpush2.bf16.msra.mxu0 0
      %234 = vmatprep.subr.bf16.mxu0 0
      %235 = vmatpush2.bf16.msra.mxu0 0
      %236 = vmatprep.subr.bf16.mxu0 0
      %237 = vmatpush2.bf16.msra.mxu0 0
      %238 = vmatprep.subr.bf16.mxu0 0
      %239 = vmatpush2.bf16.msra.mxu0 0
      %240 = vmatprep.mubr.bf16.mxu0 0
      %241 = vmatmul.mubr.bf16.gmra.mxu0 %v204
      %v242 = vpop.f32.mrf.mxu0
      %v243 = vadd.f32 0.0, %v242
      %v244 = vpop.f32.mrf.mxu0
      %v245 = vpop.f32.mrf.mxu0
      %v246 = vpop.f32.mrf.mxu0
      %247 = vdwg.mxu0
      %v248 = vunpack.c.l.bf16 %v32
      %v249 = vunpack.c.l.bf16 %v33
      %v250 = vadd.f32 %v248, %v198
      %v251 = vadd.f32 %v249, %v243
      %v252 = vpack.c.bf16 %v251, %v250
      %v253 = vld [vmem:[%s1] sm:$0xf]
      %v254 = vld [vmem:[%s1 + $0x4] sm:$0xf]
      %v255 = vld [vmem:[%s1 + $0x8] sm:$0xf]
      %v256 = vld [vmem:[%s1 + $0xc] sm:$0xf]
      %v257 = vld [vmem:[%s2] sm:$0x1]
      %v259 = vlaneseq
      %v260 = vshrl.u32 %v259, 7
      %v261 = vsub.s32 0, %v260
      %v262 = vrot.slane %v257, %v261
      %v268 = vunpack.c.l.b16 %v253
      %v269 = vunpack.c.l.b16 %v254
      %v270 = vunpack.c.l.b16 %v255
      %v271 = vunpack.c.l.b16 %v256
      %v272 = vpack.c.b16 %v269, %v268
      %v273 = vpack.c.b16 %v271, %v270
      %v277 = vsel %vm34, %v252, 0
      %279 = vmatprep.subr.bf16.mxu0 0
      %280 = vmatpush1.bf16.msra.mxu0 0
      %281 = vmatprep.subr.bf16.mxu0 0
      %282 = vmatpush1.bf16.msra.mxu0 0
      %283 = vmatprep.subr.bf16.mxu0 0
      %284 = vmatpush1.bf16.msra.mxu0 0
      %285 = vmatprep.subr.bf16.mxu0 0
      %286 = vmatpush1.bf16.msra.mxu0 0
      %287 = vmatprep.subr.bf16.mxu0 0
      %288 = vmatpush1.bf16.msra.mxu0 0
      %289 = vmatprep.subr.bf16.mxu0 0
      %290 = vmatpush1.bf16.msra.mxu0 0
      %291 = vmatprep.subr.bf16.mxu0 0
      %292 = vmatpush1.bf16.msra.mxu0 %v273
      %293 = vmatprep.subr.bf16.mxu0 0
      %294 = vmatpush1.bf16.msra.mxu0 %v272
      %295 = vmatprep.subr.bf16.mxu0 0
      %296 = vmatpush2.bf16.msra.mxu0 0
      %297 = vmatprep.subr.bf16.mxu0 0
      %298 = vmatpush2.bf16.msra.mxu0 0
      %299 = vmatprep.subr.bf16.mxu0 0
      %300 = vmatpush2.bf16.msra.mxu0 0
      %301 = vmatprep.subr.bf16.mxu0 0
      %302 = vmatpush2.bf16.msra.mxu0 0
      %303 = vmatprep.subr.bf16.mxu0 0
      %304 = vmatpush2.bf16.msra.mxu0 0
      %305 = vmatprep.subr.bf16.mxu0 0
      %306 = vmatpush2.bf16.msra.mxu0 0
      %307 = vmatprep.subr.bf16.mxu0 0
      %308 = vmatpush2.bf16.msra.mxu0 0
      %309 = vmatprep.subr.bf16.mxu0 0
      %310 = vmatpush2.bf16.msra.mxu0 0
      %311 = vmatprep.mubr.bf16.mxu0 0
      %312 = vmatmul.mubr.bf16.gmra.mxu0 %v277
      %v313 = vpop.f32.mrf.mxu0
      %v314 = vadd.f32 %v262, %v313
      %v315 = vpop.f32.mrf.mxu0
      %v316 = vpop.f32.mrf.mxu0
      %v317 = vadd.f32 %v262, %v316
      %v318 = vpop.f32.mrf.mxu0
      %319 = vdwg.mxu0
      %v320 = vtanh.pop %v314
      %v321 = vtanh.pop %v317
      %v322 = vpack.c.bf16 %v321, %v320
      %v323 = vld [vmem:[%s3] sm:$0xf]
      %v324 = vld [vmem:[%s3 + $0x4] sm:$0xf]
      %v325 = vld [vmem:[%s3 + $0x8] sm:$0xf]
      %v326 = vld [vmem:[%s3 + $0xc] sm:$0xf]
      %v327 = vld [vmem:[%s3 + $0x10] sm:$0xf]
      %v328 = vld [vmem:[%s3 + $0x14] sm:$0xf]
      %v329 = vld [vmem:[%s3 + $0x18] sm:$0xf]
      %v330 = vld [vmem:[%s3 + $0x1c] sm:$0xf]
      %v339 = vunpack.c.l.b16 %v323
      %v340 = vunpack.c.l.b16 %v324
      %v341 = vunpack.c.l.b16 %v325
      %v342 = vunpack.c.l.b16 %v326
      %v343 = vunpack.c.l.b16 %v327
      %v344 = vunpack.c.l.b16 %v328
      %v345 = vunpack.c.l.b16 %v329
      %v346 = vunpack.c.l.b16 %v330
      %v347 = vpack.c.b16 %v340, %v339
      %v348 = vpack.c.b16 %v342, %v341
      %v349 = vpack.c.b16 %v344, %v343
      %v350 = vpack.c.b16 %v346, %v345
      %vm355 = vcmask 523264
      %v357 = vsel %vm355, %v322, 0
      %359 = vmatprep.subr.bf16.mxu0 0
      %360 = vmatpush1.bf16.msra.mxu0 0
      %361 = vmatprep.subr.bf16.mxu0 0
      %362 = vmatpush1.bf16.msra.mxu0 0
      %363 = vmatprep.subr.bf16.mxu0 0
      %364 = vmatpush1.bf16.msra.mxu0 0
      %365 = vmatprep.subr.bf16.mxu0 0
      %366 = vmatpush1.bf16.msra.mxu0 0
      %367 = vmatprep.subr.bf16.mxu0 0
      %368 = vmatpush1.bf16.msra.mxu0 %v350
      %369 = vmatprep.subr.bf16.mxu0 0
      %370 = vmatpush1.bf16.msra.mxu0 %v349
      %371 = vmatprep.subr.bf16.mxu0 0
      %372 = vmatpush1.bf16.msra.mxu0 %v348
      %373 = vmatprep.subr.bf16.mxu0 0
      %374 = vmatpush1.bf16.msra.mxu0 %v347
      %375 = vmatprep.subr.bf16.mxu0 0
      %376 = vmatpush2.bf16.msra.mxu0 0
      %377 = vmatprep.subr.bf16.mxu0 0
      %378 = vmatpush2.bf16.msra.mxu0 0
      %379 = vmatprep.subr.bf16.mxu0 0
      %380 = vmatpush2.bf16.msra.mxu0 0
      %381 = vmatprep.subr.bf16.mxu0 0
      %382 = vmatpush2.bf16.msra.mxu0 0
      %383 = vmatprep.subr.bf16.mxu0 0
      %384 = vmatpush2.bf16.msra.mxu0 0
      %385 = vmatprep.subr.bf16.mxu0 0
      %386 = vmatpush2.bf16.msra.mxu0 0
      %387 = vmatprep.subr.bf16.mxu0 0
      %388 = vmatpush2.bf16.msra.mxu0 0
      %389 = vmatprep.subr.bf16.mxu0 0
      %390 = vmatpush2.bf16.msra.mxu0 0
      %391 = vmatprep.mubr.bf16.mxu0 0
      %392 = vmatmul.mubr.bf16.gmra.mxu0 %v357
      %v393 = vpop.f32.mrf.mxu0
      %v394 = vadd.f32 0.0, %v393
      %v395 = vpop.f32.mrf.mxu0
      %v396 = vpop.f32.mrf.mxu0
      %v397 = vadd.f32 0.0, %v396
      %v398 = vpop.f32.mrf.mxu0
      %399 = vdwg.mxu0
      %v400 = vadd.f32 %v250, %v394
      %v401 = vadd.f32 %v251, %v397
      %v402 = vld [vmem:[%s4] sm:$0x1]
      %v404 = vlaneseq
      %v405 = vshrl.u32 %v404, 7
      %v406 = vsub.s32 0, %v405
      %v407 = vrot.slane %v402, %v406
      %v409 = vadd.f32 %v400, %v407
      %v410 = vadd.f32 %v401, %v407
      %411 = vst.msk [vmem:[#allocation2] sm:$0xff] %vm34, %v409
      %412 = vst.msk [vmem:[#allocation2 + $0x8] sm:$0xff] %vm34, %v410
    $region33: #{tpu_custom_call.1} parent=1 // pred_fallthru
      _
    %v413 = vld [vmem:[#allocation2] sm:$0xff]
    %v414 = vld [vmem:[#allocation2 + $0x8] sm:$0xff]
    %v415 = vpack.c.bf16 %v414, %v413
    %v416 = vld [vmem:[%s5] sm:$0xf]
    %v417 = vld [vmem:[%s5 + $0x4] sm:$0xf]
    %v418 = vld [vmem:[%s5 + $0x8] sm:$0xf]
    %v419 = vld [vmem:[%s5 + $0xc] sm:$0xf]
    %v420 = vld [vmem:[%s6] sm:$0x1]
    %v422 = vlaneseq
    %v423 = vshrl.u32 %v422, 7
    %v424 = vsub.s32 0, %v423
    %v425 = vrot.slane %v420, %v424
    %v431 = vunpack.c.l.b16 %v416
    %v432 = vunpack.c.l.b16 %v417
    %v433 = vunpack.c.l.b16 %v418
    %v434 = vunpack.c.l.b16 %v419
    %v435 = vpack.c.b16 %v432, %v431
    %v436 = vpack.c.b16 %v434, %v433
    %vm439 = vcmask 261120
    %v441 = vsel %vm439, %v415, 0
    %443 = vmatprep.subr.bf16.mxu0 0
    %444 = vmatpush1.bf16.msra.mxu0 0
    %445 = vmatprep.subr.bf16.mxu0 0
    %446 = vmatpush1.bf16.msra.mxu0 0
    %447 = vmatprep.subr.bf16.mxu0 0
    %448 = vmatpush1.bf16.msra.mxu0 0
    %449 = vmatprep.subr.bf16.mxu0 0
    %450 = vmatpush1.bf16.msra.mxu0 0
    %451 = vmatprep.subr.bf16.mxu0 0
    %452 = vmatpush1.bf16.msra.mxu0 0
    %453 = vmatprep.subr.bf16.mxu0 0
    %454 = vmatpush1.bf16.msra.mxu0 0
    %455 = vmatprep.subr.bf16.mxu0 0
    %456 = vmatpush1.bf16.msra.mxu0 %v436
    %457 = vmatprep.subr.bf16.mxu0 0
    %458 = vmatpush1.bf16.msra.mxu0 %v435
    %459 = vmatprep.subr.bf16.mxu0 0
    %460 = vmatpush2.bf16.msra.mxu0 0
    %461 = vmatprep.subr.bf16.mxu0 0
    %462 = vmatpush2.bf16.msra.mxu0 0
    %463 = vmatprep.subr.bf16.mxu0 0
    %464 = vmatpush2.bf16.msra.mxu0 0
    %465 = vmatprep.subr.bf16.mxu0 0
    %466 = vmatpush2.bf16.msra.mxu0 0
    %467 = vmatprep.subr.bf16.mxu0 0
    %468 = vmatpush2.bf16.msra.mxu0 0
    %469 = vmatprep.subr.bf16.mxu0 0
    %470 = vmatpush2.bf16.msra.mxu0 0
    %471 = vmatprep.subr.bf16.mxu0 0
    %472 = vmatpush2.bf16.msra.mxu0 0
    %473 = vmatprep.subr.bf16.mxu0 0
    %474 = vmatpush2.bf16.msra.mxu0 0
    %475 = vmatprep.mubr.bf16.mxu0 0
    %476 = vmatmul.mubr.bf16.gmra.mxu0 %v441
    %v477 = vpop.f32.mrf.mxu0
    %v478 = vadd.f32 %v425, %v477
    %v479 = vpop.f32.mrf.mxu0
    %v480 = vpop.f32.mrf.mxu0
    %v481 = vadd.f32 %v425, %v480
    %v482 = vpop.f32.mrf.mxu0
    %483 = vdwg.mxu0
    %484 = vst [vmem:[#allocation3] sm:$0xff] %v478
    %485 = vst [vmem:[#allocation3 + $0x8] sm:$0xff] %v481
    // Predicated region
    $region34: #{tpu_custom_call.1} parent=1 // pred_check
      _
    $region35: #{tpu_custom_call.1} parent=1 // pred_check_branch
      %487 = sbr.rel (0) target = $region37
    $region36: #{tpu_custom_call.1} parent=1 // pred_region
      %s489 = ssub.s32 256, 256
      %490 = vsyncadd [#allocation4], %s489
      %s491 = sshll.u32 [#allocation3], 4
      %s492 = int_to_ptr.vmem [resolvable:$true] %s491
      %497 = dma.vmem_to_hbm [thread:$0]  %s492, 256, %s7, [#allocation4], 128, 128, 8
    $region37: #{tpu_custom_call.1} parent=1 // pred_fallthru
      _
    // Predicated region
    $region38: #{tpu_custom_call.1} parent=1 // pred_check
      _
    $region39: #{tpu_custom_call.1} parent=1 // pred_check_branch
      %499 = sbr.rel (0) target = $region41
    $region40: #{tpu_custom_call.1} parent=1 // pred_region
      %500 = dma.done [#allocation4], 256
    $region41: #{tpu_custom_call.1} parent=1 // pred_fallthru
      _
    %501 = vsyncpa [#allocation4], 1

</llo_original>
